<compile_context>
chip_gen: v6e
topology: v6e:2x2x1
jax: 0.10.0
libtpu: 0.0.40
codegen_flags: <defaults>
</compile_context>

<pallas_src>
import math

import jax
import jax.numpy as jnp
from jax.experimental import pallas as pl
from jax.experimental.pallas import tpu as pltpu


def _copy_kernel(x_ref, o_ref):
    # Plain lane-dense tile copy; the flatten already happened in the wrapper.
    o_ref[...] = x_ref[...]


def _tpu_params():
    """Generation-aware (block_byte_budget, vmem_limit_bytes, num_tensorcores)."""
    vmem_cap = 128 * 1024 * 1024
    try:
        vmem_cap = int(pltpu.get_tpu_info().vmem_capacity_bytes)
    except Exception:
        pass

    num_tc = 1
    try:
        kind = jax.devices()[0].device_kind.lower()
        if "v7" in kind:  # v7x has 2 TensorCores per chip
            num_tc = 2
    except Exception:
        pass

    if vmem_cap >= 96 * 1024 * 1024:
        # v5e / v6e: 128 MiB physical VMEM -> big blocks, 64 MiB scoped limit.
        block_budget = 12 * 1024 * 1024
        vmem_limit = 64 * 1024 * 1024
    else:
        # v7x: 64 MiB physical VMEM -> ~5 MiB blocks, 44 MiB scoped limit.
        block_budget = 5 * 1024 * 1024
        vmem_limit = 44 * 1024 * 1024
    return block_budget, vmem_limit, num_tc


def _choose_blocks(B: int, flat: int, itemsize: int, block_budget: int, num_tc: int):
    """Pick (tb, tf) tile sizes for a (B, flat) lane-dense copy.

    Constraints honored: tf is a multiple of 128 or == flat; tb is a multiple
    of the dtype's packed sublane tile or == B.  Grid uses cdiv, so tiles need
    not divide the array extents.
    """
    # Packed sublane tile: 8 (f32), 16 (bf16/f16), 32 (int8/fp8).
    min_sub = max(8, 32 // max(1, itemsize))

    # ---- flat (lane) axis: prefer full rows -> one linear HBM burst / block.
    row_bytes = flat * itemsize
    if flat % 128 != 0:
        tf = flat  # full extent (wrapper pads beforehand if this would be huge)
    elif min(B, min_sub) * row_bytes <= block_budget or flat <= 128:
        tf = flat  # full, contiguous rows
    else:
        # Full rows do not fit even with the minimum batch tile: use a fixed,
        # near-budget multiple of 128 and a cdiv grid.
        tf = max(128, (block_budget // (min_sub * itemsize)) // 128 * 128)
        tf = min(tf, flat)

    # ---- batch (sublane) axis: fill the remaining budget with whole rows.
    if B <= min_sub:
        tb = B  # full extent (allowed by the BlockSpec tiling rule)
    else:
        rows_fit = max(1, block_budget // max(1, tf * itemsize))
        tb = max(min_sub, rows_fit // min_sub * min_sub)
        tb = min(tb, B // min_sub * min_sub)

    # ---- multi-TC chips only: ensure >= 2 grid steps so "parallel" axes can
    # be sharded across cores.  On 1-TC chips this would just add overhead.
    if num_tc > 1 and pl.cdiv(B, tb) * pl.cdiv(flat, tf) < num_tc:
        if tb >= 2 * min_sub:
            tb = (tb // 2) // min_sub * min_sub
        elif tf % 256 == 0:
            tf //= 2

    return tb, tf


def vectorize(x: jax.Array) -> jax.Array:
    """Pallas equivalent of Vectorize.forward: x.view(x.shape[0], -1)."""
    B = x.shape[0]
    flat = math.prod(x.shape[1:]) if len(x.shape) > 1 else 1
    itemsize = x.dtype.itemsize

    block_budget, vmem_limit, num_tc = _tpu_params()
    min_sub = max(8, 32 // max(1, itemsize))

    # Metadata-only flatten in the wrapper (works for any rank >= 1).
    x2d = jnp.reshape(x, (B, flat))

    # If the flat axis is not lane-aligned AND a full-extent row block would
    # blow the VMEM budget, pad to a multiple of 128 so it can be tiled.
    pad = 0
    if flat % 128 != 0 and flat * itemsize * min(B, min_sub) > block_budget:
        pad = (-flat) % 128
        x2d = jnp.pad(x2d, ((0, 0), (0, pad)))
    flat_p = flat + pad

    tb, tf = _choose_blocks(B, flat_p, itemsize, block_budget, num_tc)
    grid = (pl.cdiv(B, tb), pl.cdiv(flat_p, tf))

    out = pl.pallas_call(
        _copy_kernel,
        out_shape=jax.ShapeDtypeStruct((B, flat_p), x.dtype),
        grid_spec=pltpu.PrefetchScalarGridSpec(
            num_scalar_prefetch=0,
            grid=grid,
            in_specs=[pl.BlockSpec((tb, tf), lambda i, j: (i, j))],
            out_specs=pl.BlockSpec((tb, tf), lambda i, j: (i, j)),
        ),
        compiler_params=pltpu.CompilerParams(
            dimension_semantics=("parallel", "parallel"),
            vmem_limit_bytes=vmem_limit,
        ),
        cost_estimate=pl.CostEstimate(
            flops=0,
            transcendentals=0,
            bytes_accessed=2 * B * flat_p * itemsize,
        ),
    )(x2d)

    if pad:
        out = out[:, :flat]
    return out


if __name__ == "__main__":
    key = jax.random.PRNGKey(0)
    # Small NCHW shape consistent with a typical conv feature map.
    B, C, H, W = 2, 4, 16, 16
    x = jax.random.normal(key, (B, C, H, W), dtype=jnp.float32)

    out = vectorize(x)
    out = jax.block_until_ready(out)

    # Reference: same semantics as torch .view on a contiguous NCHW tensor.
    ref = x.reshape(B, -1)
    assert out.shape == (B, C * H * W), out.shape
    assert out.dtype == x.dtype
    assert jnp.array_equal(out, ref), "Pallas vectorize mismatch vs reshape"

    print("KERNEL_OK")
</pallas_src>

<mosaic_0001>
module attributes {stable_mosaic.version = 11 : i64} {
  func.func @_copy_kernel(%arg0: i32, %arg1: i32, %arg2: memref<2x1024xf32, #tpu.memory_space<vmem>>, %arg3: memref<2x1024xf32, #tpu.memory_space<vmem>>) attributes {dimension_semantics = [#tpu.dimension_semantics<parallel>, #tpu.dimension_semantics<parallel>], iteration_bounds = array<i64: 1, 1>, scalar_prefetch = 0 : i64, scratch_operands = 0 : i64, tpu.core_type = #tpu.core_type<tc>, window_params = [{transform_indices = @transform_0, window_bounds = array<i64: 2, 1024>}, {transform_indices = @transform_1, window_bounds = array<i64: 2, 1024>}]} {
    %c0 = arith.constant 0 : index
    %c0_0 = arith.constant 0 : index
    %0 = vector.load %arg2[%c0, %c0_0] : memref<2x1024xf32, #tpu.memory_space<vmem>>, vector<2x1024xf32>
    %c0_1 = arith.constant 0 : index
    %c0_2 = arith.constant 0 : index
    %1 = vector.load %arg3[%c0_1, %c0_2] : memref<2x1024xf32, #tpu.memory_space<vmem>>, vector<2x1024xf32>
    tpu.vector_store %arg3[%c0_1, %c0_2], %0 {strides = array<i32>} : memref<2x1024xf32, #tpu.memory_space<vmem>>, vector<2x1024xf32>,
    return
  }
  func.func @transform_0(%arg0: i32, %arg1: i32) -> (i32, i32) {
    %c0_i32 = arith.constant 0 : i32
    return %arg0, %arg1 : i32, i32
  }
  func.func @transform_1(%arg0: i32, %arg1: i32) -> (i32, i32) {
    %c0_i32 = arith.constant 0 : i32
    return %arg0, %arg1 : i32, i32
  }
}

</mosaic_0001>

<llo_original>
// kernel: tpu_custom_call.1
$region0: #{tpu_custom_call.1}
  #allocation0 [shape = 'u32[]', space=smem, size = 0x4, offset = 0x4, fixed_abs, tag = 'smem constant byte address 0x4 - core index']
  #allocation1 [shape = 'u32[144,128]{1,0:T(1,128)}', space=vmem, size = 0x12000, scoped, tag = 'internal scratch']
  %s0 = inlined_call_operand.hbm [shape: f32[2,1024], index: 0, kind: input, shape index: {}]
  %s1 = inlined_call_operand.hbm [shape: f32[2,1024], index: 1, kind: output, shape index: {}]
  %s2 = sld [smem:[#allocation0]]
  $region18: #{tpu_custom_call.1} parent=0
    _
  %s4 = ssub.s32 1, %s2
  %s5 = scalar_select 0, %s4, %s2
  $region1: #{tpu_custom_call.1} parent=0
    #allocation2 [shape = 'u8[8192]{0}', space=vmem, size = 0x2000, scoped, tag = 'input window, operand 0, single buffered']
    #allocation3 [shape = 's32[1]{0}', space=sflag, size = 0x4, scoped, tag = 'scoped memory for tpu_custom_call.1']
    #allocation4 [shape = 's32[1]{0}', space=sflag, size = 0x4, scoped, tag = 'scoped memory for tpu_custom_call.1']
    #allocation5 [shape = 'u8[8192]{0}', space=vmem, size = 0x2000, scoped, tag = 'output window, operand 0, single buffered']
    %6 = vsyncpa [#allocation3], 0
    %7 = vsyncpa [#allocation4], 0
    // Predicated region
    $region2: #{tpu_custom_call.1} parent=1 // pred_check
      _
    $region3: #{tpu_custom_call.1} parent=1 // pred_check_branch
      %9 = sbr.rel (0) target = $region5
    $region4: #{tpu_custom_call.1} parent=1 // pred_region
      %s11 = ssub.s32 256, 256
      %12 = vsyncadd [#allocation3], %s11
      %s14 = sshll.u32 [#allocation2], 4
      %s15 = int_to_ptr.vmem [resolvable:$true] %s14
      %17 = dma.hbm_to_vmem [thread:$0]  %s0, 256, %s15, [#allocation3]
    $region5: #{tpu_custom_call.1} parent=1 // pred_fallthru
      _
    // Predicated region
    $region6: #{tpu_custom_call.1} parent=1 // pred_check
      _
    $region7: #{tpu_custom_call.1} parent=1 // pred_check_branch
      %19 = sbr.rel (0) target = $region9
    $region8: #{tpu_custom_call.1} parent=1 // pred_region
      %20 = dma.done [#allocation3], 256
    $region9: #{tpu_custom_call.1} parent=1 // pred_fallthru
      _
    %v21 = vld [vmem:[#allocation2] sm:$0xff]
    %v22 = vld [vmem:[#allocation2 + $0x8] sm:$0xff]
    %23 = vst [vmem:[#allocation5] sm:$0xff] %v21
    %24 = vst [vmem:[#allocation5 + $0x8] sm:$0xff] %v22
    // Predicated region
    $region10: #{tpu_custom_call.1} parent=1 // pred_check
      _
    $region11: #{tpu_custom_call.1} parent=1 // pred_check_branch
      %26 = sbr.rel (0) target = $region13
    $region12: #{tpu_custom_call.1} parent=1 // pred_region
      %s28 = ssub.s32 256, 256
      %29 = vsyncadd [#allocation4], %s28
      %s31 = sshll.u32 [#allocation5], 4
      %s32 = int_to_ptr.vmem [resolvable:$true] %s31
      %34 = dma.vmem_to_hbm [thread:$0]  %s32, 256, %s1, [#allocation4]
    $region13: #{tpu_custom_call.1} parent=1 // pred_fallthru
      _
    // Predicated region
    $region14: #{tpu_custom_call.1} parent=1 // pred_check
      _
    $region15: #{tpu_custom_call.1} parent=1 // pred_check_branch
      %36 = sbr.rel (0) target = $region17
    $region16: #{tpu_custom_call.1} parent=1 // pred_region
      %37 = dma.done [#allocation4], 256
    $region17: #{tpu_custom_call.1} parent=1 // pred_fallthru
      _
    %38 = vsyncpa [#allocation3], 1
    %39 = vsyncpa [#allocation4], 1

</llo_original>
